<compile_context>
chip_gen: v7x
topology: tpu7x:2x2x1
jax: 0.10.0
libtpu: 0.0.40
codegen_flags: <defaults>
</compile_context>

<pallas_src>
import functools

import jax
import jax.numpy as jnp
from jax import lax
from jax.experimental import pallas as pl
from jax.experimental.pallas import tpu as pltpu


def _round_up(a: int, m: int) -> int:
    return (a + m - 1) // m * m


def _round_down(a: int, m: int) -> int:
    return (a // m) * m


def attentive_pool_kernel(seq_len, needs_t_mask,
                          x_ref, w_ref, b_ref, o_ref, m_sc, l_sc, acc_sc):
    # x_ref : (Bn, Tt, H) batch/seq tile in the input dtype
    # w_ref : (1, H) attention weight row (lanes = H)
    # b_ref : (1,) f32 bias scalar in SMEM
    # o_ref : (Bn, H) pooled output tile (written on the last T step)
    # m_sc / l_sc : (Bn, 1) f32 running max / denom ; acc_sc : (Bn, H) f32 running sum
    kt = pl.program_id(1)

    @pl.when(kt == 0)
    def _():
        m_sc[...] = jnp.full_like(m_sc, -jnp.inf)
        l_sc[...] = jnp.zeros_like(l_sc)
        acc_sc[...] = jnp.zeros_like(acc_sc)

    x = x_ref[...]                          # (Bn, Tt, H), no full-tile f32 cast
    w = w_ref[...].astype(x.dtype)          # (1, H)
    bias = b_ref[0]                         # f32 scalar from SMEM

    # Attention logits: VPU multiply in input dtype + f32 lane reduction over H.
    # (MXU would run at <1/128 utilization for a 1-column matmul.)
    logits = jnp.sum(x * w[None, :, :], axis=-1, dtype=jnp.float32) + bias  # (Bn, Tt)

    if needs_t_mask:  # static: only emitted when block_t does not divide T
        t_idx = kt * x.shape[1] + lax.broadcasted_iota(jnp.int32, logits.shape, 1)
        valid = t_idx < seq_len
        logits = jnp.where(valid, logits, -jnp.inf)
        x = jnp.where(valid[:, :, None], x, jnp.zeros_like(x))

    # Online (streaming) softmax over T; normalization deferred to the end.
    m_prev = m_sc[...]                                                # (Bn, 1)
    m_new = jnp.maximum(m_prev, jnp.max(logits, axis=-1, keepdims=True))
    alpha = jnp.exp(m_prev - m_new)                                   # (Bn, 1)  EUP
    e = jnp.exp(logits - m_new)                                       # (Bn, Tt) EUP

    l_sc[...] = alpha * l_sc[...] + jnp.sum(e, axis=-1, keepdims=True)
    acc_sc[...] = alpha * acc_sc[...] + jnp.sum(
        x * e[:, :, None].astype(x.dtype), axis=1, dtype=jnp.float32)  # (Bn, H)
    m_sc[...] = m_new

    @pl.when(kt == pl.num_programs(1) - 1)
    def _():
        inv = pl.reciprocal(l_sc[...], approx=False)                  # (Bn, 1)
        o_ref[...] = (acc_sc[...] * inv).astype(o_ref.dtype)


def attentive_pooling(x, w, b, *, block_n=None, block_t=None):
    """x: (N, T, H), w: (1, H) [torch nn.Linear(H,1).weight], b: (1,) -> (N, H)."""
    N, T, H = x.shape
    assert w.shape == (1, H) and b.shape == (1,)
    b = b.astype(jnp.float32)
    itemsize = jnp.dtype(x.dtype).itemsize
    mib = 1024 * 1024

    # --- per-generation VMEM budget (v5e/v6e: 128 MiB physical, v7x: 64 MiB) ---
    try:
        vmem_cap = int(pltpu.get_tpu_info().vmem_capacity_bytes)
    except Exception:
        vmem_cap = 64 * mib
    if vmem_cap >= 96 * mib:
        vmem_limit = 80 * mib                                     # v5e / v6e
    else:
        vmem_limit = min(44 * mib, max(vmem_cap - 16 * mib, 16 * mib))  # v7x / fallback

    # VMEM cost per x-tile byte: 2x (double-buffered input) + ~3 f32 temporaries.
    factor = 2 + (3 * 4) // itemsize
    tile_budget = (vmem_limit * 3 // 4) // factor

    # --- pick (block_n, block_t) ---
    n_pad8 = N if N < 8 else _round_up(N, 8)
    row_bytes = T * H * itemsize
    if T <= 8 or 8 * row_bytes <= tile_budget:
        auto_t = T                                                # full rows per step
        rows = max(8, tile_budget // max(row_bytes, 1))
        auto_n = max(min(_round_down(rows, 8), n_pad8), min(8, n_pad8))
        if N >= 32:                                               # >=4 N steps (2 per TC on v7x)
            auto_n = min(auto_n, _round_up(pl.cdiv(N, 4), 8))
    else:
        auto_n = min(8, n_pad8)                                   # rows too big: tile T too
        t_rows = tile_budget // max(auto_n * H * itemsize, 1)
        auto_t = min(T, max(8, _round_down(t_rows, 8)))
    block_n = auto_n if block_n is None else block_n
    block_t = auto_t if block_t is None else block_t
    needs_t_mask = (T % block_t) != 0

    grid = (pl.cdiv(N, block_n), pl.cdiv(T, block_t))

    cost = pl.CostEstimate(
        flops=4 * N * T * H,
        transcendentals=N * T,
        bytes_accessed=(N * T * H + N * H) * itemsize
        + H * jnp.dtype(w.dtype).itemsize + 4,
    )

    kernel = functools.partial(attentive_pool_kernel, T, needs_t_mask)

    return pl.pallas_call(
        kernel,
        out_shape=jax.ShapeDtypeStruct((N, H), x.dtype),
        grid_spec=pltpu.PrefetchScalarGridSpec(
            num_scalar_prefetch=0,
            grid=grid,
            in_specs=[
                pl.BlockSpec((block_n, block_t, H), lambda i, kt: (i, kt, 0)),  # x tile
                pl.BlockSpec((1, H), lambda i, kt: (0, 0)),                     # shared W row
                pl.BlockSpec(memory_space=pltpu.MemorySpace.SMEM),              # bias scalar
            ],
            out_specs=pl.BlockSpec((block_n, H), lambda i, kt: (i, 0)),
            scratch_shapes=[
                pltpu.VMEM((block_n, 1), jnp.float32),   # running max
                pltpu.VMEM((block_n, 1), jnp.float32),   # running denom
                pltpu.VMEM((block_n, H), jnp.float32),   # running weighted sum
            ],
        ),
        compiler_params=pltpu.CompilerParams(
            dimension_semantics=("parallel", "arbitrary"),
            vmem_limit_bytes=vmem_limit,
        ),
        cost_estimate=cost,
    )(x, w, b)


def attentive_pooling_ref(x, w, b):
    # Pure-JAX reference matching the PyTorch module.
    logits = jnp.einsum("nth,oh->nt", x, w) + b[0]     # (N, T)
    att = jax.nn.softmax(logits, axis=-1)[..., None]   # (N, T, 1)
    return jnp.sum(x * att, axis=1)                    # (N, H)


if __name__ == "__main__":
    key = jax.random.PRNGKey(0)

    # Case 1: small, dense shapes; auto tiling (single block, no T tiling).
    N, T, H = 16, 8, 128
    kx, kw, kb = jax.random.split(key, 3)
    x = jax.random.normal(kx, (N, T, H), dtype=jnp.float32)
    # deterministic synthetic params for nn.Linear(H, 1): weight (1, H), bias (1,)
    w = jax.random.normal(kw, (1, H), dtype=jnp.float32) * (1.0 / jnp.sqrt(H))
    b = jax.random.normal(kb, (1,), dtype=jnp.float32) * 0.1

    out = jax.block_until_ready(attentive_pooling(x, w, b))
    ref = attentive_pooling_ref(x, w, b)
    assert out.shape == (N, H)
    assert jnp.allclose(out, ref, atol=1e-5, rtol=1e-5), "case 1 mismatch vs reference"

    # Case 2: ragged batch block (no padding) + T-tiled online softmax with masked tail.
    N2, T2, H2 = 13, 20, 128
    kx2, _, _ = jax.random.split(jax.random.PRNGKey(1), 3)
    x2 = jax.random.normal(kx2, (N2, T2, H2), dtype=jnp.float32)
    w2 = jax.random.normal(kw, (1, H2), dtype=jnp.float32) * (1.0 / jnp.sqrt(H2))
    out2 = jax.block_until_ready(attentive_pooling(x2, w2, b, block_n=8, block_t=8))
    ref2 = attentive_pooling_ref(x2, w2, b)
    assert out2.shape == (N2, H2)
    assert jnp.allclose(out2, ref2, atol=1e-5, rtol=1e-5), "case 2 mismatch vs reference"

    print("KERNEL_OK")
</pallas_src>

<mosaic_0001>
module attributes {stable_mosaic.version = 11 : i64} {
  func.func @attentive_pool_kernel(%arg0: i32, %arg1: i32, %arg2: memref<16x8x128xf32, #tpu.memory_space<vmem>>, %arg3: memref<1x128xf32, #tpu.memory_space<vmem>>, %arg4: memref<1xf32, #tpu.memory_space<smem>>, %arg5: memref<16x128xf32, #tpu.memory_space<vmem>>, %arg6: memref<16x1xf32, #tpu.memory_space<vmem>>, %arg7: memref<16x1xf32, #tpu.memory_space<vmem>>, %arg8: memref<16x128xf32, #tpu.memory_space<vmem>>) attributes {dimension_semantics = [#tpu.dimension_semantics<parallel>, #tpu.dimension_semantics<arbitrary>], iteration_bounds = array<i64: 1, 1>, scalar_prefetch = 0 : i64, scratch_operands = 3 : i64, tpu.core_type = #tpu.core_type<tc>, window_params = [{transform_indices = @transform_0, window_bounds = array<i64: 16, 8, 128>}, {pipeline_mode = #tpu.pipeline_mode<synchronous>, transform_indices = @transform_1, window_bounds = array<i64: 1, 128>}, {transform_indices = @transform_2, window_bounds = array<i64: 1>}, {transform_indices = @transform_3, window_bounds = array<i64: 16, 128>}]} {
    %c0_i32 = arith.constant 0 : i32
    %0 = arith.cmpi eq, %arg1, %c0_i32 : i32
    %1 = arith.extui %0 : i1 to i32
    %c0_i32_0 = arith.constant 0 : i32
    %2 = arith.cmpi ne, %1, %c0_i32_0 : i32
    scf.if %2 {
      %cst_23 = arith.constant 0xFF800000 : f32
      %40 = vector.broadcast %cst_23 : f32 to vector<16x1xf32>
      %c0_24 = arith.constant 0 : index
      %c0_25 = arith.constant 0 : index
      %41 = vector.load %arg6[%c0_24, %c0_25] : memref<16x1xf32, #tpu.memory_space<vmem>>, vector<16x1xf32>
      tpu.vector_store %arg6[%c0_24, %c0_25], %40 {strides = array<i32>} : memref<16x1xf32, #tpu.memory_space<vmem>>, vector<16x1xf32>,
      %cst_26 = arith.constant 0.000000e+00 : f32
      %42 = vector.broadcast %cst_26 : f32 to vector<16x1xf32>
      %c0_27 = arith.constant 0 : index
      %c0_28 = arith.constant 0 : index
      %43 = vector.load %arg7[%c0_27, %c0_28] : memref<16x1xf32, #tpu.memory_space<vmem>>, vector<16x1xf32>
      tpu.vector_store %arg7[%c0_27, %c0_28], %42 {strides = array<i32>} : memref<16x1xf32, #tpu.memory_space<vmem>>, vector<16x1xf32>,
      %cst_29 = arith.constant 0.000000e+00 : f32
      %44 = vector.broadcast %cst_29 : f32 to vector<16x128xf32>
      %c0_30 = arith.constant 0 : index
      %c0_31 = arith.constant 0 : index
      %45 = vector.load %arg8[%c0_30, %c0_31] : memref<16x128xf32, #tpu.memory_space<vmem>>, vector<16x128xf32>
      tpu.vector_store %arg8[%c0_30, %c0_31], %44 {strides = array<i32>} : memref<16x128xf32, #tpu.memory_space<vmem>>, vector<16x128xf32>,
    } else {
    }
    %c0 = arith.constant 0 : index
    %c0_1 = arith.constant 0 : index
    %c0_2 = arith.constant 0 : index
    %3 = vector.load %arg2[%c0, %c0_1, %c0_2] : memref<16x8x128xf32, #tpu.memory_space<vmem>>, vector<16x8x128xf32>
    %c0_3 = arith.constant 0 : index
    %c0_4 = arith.constant 0 : index
    %4 = vector.load %arg3[%c0_3, %c0_4] : memref<1x128xf32, #tpu.memory_space<vmem>>, vector<1x128xf32>
    %c0_5 = arith.constant 0 : index
    %5 = memref.load %arg4[%c0_5] : memref<1xf32, #tpu.memory_space<smem>>
    %6 = vector.shape_cast %4 : vector<1x128xf32> to vector<1x1x128xf32>
    %7 = vector.broadcast %6 : vector<1x1x128xf32> to vector<16x8x128xf32>
    %8 = arith.mulf %3, %7 : vector<16x8x128xf32>
    %cst = arith.constant dense<0.000000e+00> : vector<16x8xf32>
    %9 = vector.multi_reduction <add>, %8, %cst [2] : vector<16x8x128xf32> to vector<16x8xf32>
    %10 = vector.broadcast %5 : f32 to vector<16x8xf32>
    %11 = arith.addf %9, %10 : vector<16x8xf32>
    %c0_6 = arith.constant 0 : index
    %c0_7 = arith.constant 0 : index
    %12 = vector.load %arg6[%c0_6, %c0_7] : memref<16x1xf32, #tpu.memory_space<vmem>>, vector<16x1xf32>
    %cst_8 = arith.constant dense<0xFF800000> : vector<16xf32>
    %13 = vector.multi_reduction <maximumf>, %11, %cst_8 [1] : vector<16x8xf32> to vector<16xf32>
    %14 = vector.shape_cast %13 : vector<16xf32> to vector<16x1xf32>
    %15 = arith.maximumf %12, %14 : vector<16x1xf32>
    %16 = arith.subf %12, %15 : vector<16x1xf32>
    %17 = math.exp %16 : vector<16x1xf32>
    %18 = vector.broadcast %15 : vector<16x1xf32> to vector<16x8xf32>
    %19 = arith.subf %11, %18 : vector<16x8xf32>
    %20 = math.exp %19 : vector<16x8xf32>
    %c0_9 = arith.constant 0 : index
    %c0_10 = arith.constant 0 : index
    %21 = vector.load %arg7[%c0_9, %c0_10] : memref<16x1xf32, #tpu.memory_space<vmem>>, vector<16x1xf32>
    %22 = arith.mulf %17, %21 : vector<16x1xf32>
    %cst_11 = arith.constant dense<0.000000e+00> : vector<16xf32>
    %23 = vector.multi_reduction <add>, %20, %cst_11 [1] : vector<16x8xf32> to vector<16xf32>
    %24 = vector.shape_cast %23 : vector<16xf32> to vector<16x1xf32>
    %25 = arith.addf %22, %24 : vector<16x1xf32>
    %c0_12 = arith.constant 0 : index
    %c0_13 = arith.constant 0 : index
    %26 = vector.load %arg7[%c0_12, %c0_13] : memref<16x1xf32, #tpu.memory_space<vmem>>, vector<16x1xf32>
    tpu.vector_store %arg7[%c0_12, %c0_13], %25 {strides = array<i32>} : memref<16x1xf32, #tpu.memory_space<vmem>>, vector<16x1xf32>,
    %c0_14 = arith.constant 0 : index
    %c0_15 = arith.constant 0 : index
    %27 = vector.load %arg8[%c0_14, %c0_15] : memref<16x128xf32, #tpu.memory_space<vmem>>, vector<16x128xf32>
    %28 = vector.broadcast %17 : vector<16x1xf32> to vector<16x128xf32>
    %29 = arith.mulf %28, %27 : vector<16x128xf32>
    %30 = vector.shape_cast %20 : vector<16x8xf32> to vector<16x8x1xf32>
    %31 = vector.broadcast %30 : vector<16x8x1xf32> to vector<16x8x128xf32>
    %32 = arith.mulf %3, %31 : vector<16x8x128xf32>
    %cst_16 = arith.constant dense<0.000000e+00> : vector<16x128xf32>
    %33 = vector.multi_reduction <add>, %32, %cst_16 [1] : vector<16x8x128xf32> to vector<16x128xf32>
    %34 = arith.addf %29, %33 : vector<16x128xf32>
    %c0_17 = arith.constant 0 : index
    %c0_18 = arith.constant 0 : index
    %35 = vector.load %arg8[%c0_17, %c0_18] : memref<16x128xf32, #tpu.memory_space<vmem>>, vector<16x128xf32>
    tpu.vector_store %arg8[%c0_17, %c0_18], %34 {strides = array<i32>} : memref<16x128xf32, #tpu.memory_space<vmem>>, vector<16x128xf32>,
    %c0_19 = arith.constant 0 : index
    %c0_20 = arith.constant 0 : index
    %36 = vector.load %arg6[%c0_19, %c0_20] : memref<16x1xf32, #tpu.memory_space<vmem>>, vector<16x1xf32>
    tpu.vector_store %arg6[%c0_19, %c0_20], %15 {strides = array<i32>} : memref<16x1xf32, #tpu.memory_space<vmem>>, vector<16x1xf32>,
    %c0_i32_21 = arith.constant 0 : i32
    %37 = arith.cmpi eq, %arg1, %c0_i32_21 : i32
    %38 = arith.extui %37 : i1 to i32
    %c0_i32_22 = arith.constant 0 : i32
    %39 = arith.cmpi ne, %38, %c0_i32_22 : i32
    scf.if %39 {
      %c0_23 = arith.constant 0 : index
      %c0_24 = arith.constant 0 : index
      %40 = vector.load %arg7[%c0_23, %c0_24] : memref<16x1xf32, #tpu.memory_space<vmem>>, vector<16x1xf32>
      %41 = tpu.reciprocal %40 : vector<16x1xf32> -> vector<16x1xf32>
      %c0_25 = arith.constant 0 : index
      %c0_26 = arith.constant 0 : index
      %42 = vector.load %arg8[%c0_25, %c0_26] : memref<16x128xf32, #tpu.memory_space<vmem>>, vector<16x128xf32>
      %43 = vector.broadcast %41 : vector<16x1xf32> to vector<16x128xf32>
      %44 = arith.mulf %42, %43 : vector<16x128xf32>
      %c0_27 = arith.constant 0 : index
      %c0_28 = arith.constant 0 : index
      %45 = vector.load %arg5[%c0_27, %c0_28] : memref<16x128xf32, #tpu.memory_space<vmem>>, vector<16x128xf32>
      tpu.vector_store %arg5[%c0_27, %c0_28], %44 {strides = array<i32>} : memref<16x128xf32, #tpu.memory_space<vmem>>, vector<16x128xf32>,
    } else {
    }
    return
  }
  func.func @transform_0(%arg0: i32, %arg1: i32) -> (i32, i32, i32) {
    %c0_i32 = arith.constant 0 : i32
    %c0_i32_0 = arith.constant 0 : i32
    return %arg0, %arg1, %c0_i32 : i32, i32, i32
  }
  func.func @transform_1(%arg0: i32, %arg1: i32) -> (i32, i32) {
    %c0_i32 = arith.constant 0 : i32
    %c0_i32_0 = arith.constant 0 : i32
    %c0_i32_1 = arith.constant 0 : i32
    return %c0_i32, %c0_i32_0 : i32, i32
  }
  func.func @transform_2(%arg0: i32, %arg1: i32) -> i32 {
    %c0_i32 = arith.constant 0 : i32
    %c0_i32_0 = arith.constant 0 : i32
    return %c0_i32 : i32
  }
  func.func @transform_3(%arg0: i32, %arg1: i32) -> (i32, i32) {
    %c0_i32 = arith.constant 0 : i32
    %c0_i32_0 = arith.constant 0 : i32
    return %arg0, %c0_i32 : i32, i32
  }
}

</mosaic_0001>

<llo_original>
// kernel: tpu_custom_call.1
$region0: #{tpu_custom_call.1}
  #allocation0 [shape = 'u32[]', space=smem, size = 0x4, offset = 0x4, fixed_abs, tag = 'smem constant byte address 0x4 - core index']
  #allocation1 [shape = 'u32[144,128]{1,0:T(1,128)}', space=vmem, size = 0x12000, scoped, tag = 'internal scratch']
  #allocation2 [shape = 'f32[16,1]{1,0:T(8,128)}', space=vmem, size = 0x2000, scoped, tag = 'scratch operand']
  #allocation3 [shape = 'f32[16,1]{1,0:T(8,128)}', space=vmem, size = 0x2000, scoped, tag = 'scratch operand']
  #allocation4 [shape = 'f32[16,128]{1,0:T(8,128)}', space=vmem, size = 0x2000, scoped, tag = 'scratch operand']
  #allocation5 [shape = 'f32[1]{0:T(128)S(6)}', space=smem, size = 0x200, scoped, tag = 'scoped memory for tpu_custom_call.1']
  %s0 = inlined_call_operand.hbm [shape: f32[16,8,128], index: 0, kind: input, shape index: {}]
  %s1 = inlined_call_operand.vmem [shape: f32[1,128], index: 1, kind: input, shape index: {}]
  %s2 = inlined_call_operand.<no memory space> [shape: f32[1], index: 2, kind: input, shape index: {}]
  %s3 = inlined_call_operand.hbm [shape: f32[16,128], index: 3, kind: output, shape index: {}]
  %s4 = sld [smem:[#allocation0]]
  $region34: #{tpu_custom_call.1} parent=0
    _
  %s6 = ssub.s32 1, %s4
  %s7 = scalar_select 0, %s6, %s4
  %8 = sst [smem:[#allocation5]] %s2
  $region1: #{tpu_custom_call.1} parent=0
    #allocation6 [shape = 'u8[65536]{0}', space=vmem, size = 0x10000, scoped, tag = 'input window, operand 0, single buffered']
    #allocation7 [shape = 's32[1]{0}', space=sflag, size = 0x4, scoped, tag = 'scoped memory for tpu_custom_call.1']
    #allocation8 [shape = 's32[1]{0}', space=sflag, size = 0x4, scoped, tag = 'scoped memory for tpu_custom_call.1']
    #allocation9 [shape = 'u8[8192]{0}', space=vmem, size = 0x2000, scoped, tag = 'output window, operand 0, single buffered']
    %9 = vsyncpa [#allocation7], 0
    %10 = vsyncpa [#allocation8], 0
    // Predicated region
    $region2: #{tpu_custom_call.1} parent=1 // pred_check
      _
    $region3: #{tpu_custom_call.1} parent=1 // pred_check_branch
      %12 = sbr.rel (0) target = $region5
    $region4: #{tpu_custom_call.1} parent=1 // pred_region
      %s14 = ssub.s32 2048, 2048
      %15 = vsyncadd [#allocation7], %s14
      %s16 = sshll.u32 [#allocation6], 4
      %s17 = int_to_ptr.vmem [resolvable:$true] %s16
      %22 = dma.hbm_to_vmem [thread:$0]  %s0, 2048, %s17, [#allocation7], 128, 128, 8
    $region5: #{tpu_custom_call.1} parent=1 // pred_fallthru
      _
    // Predicated region
    $region6: #{tpu_custom_call.1} parent=1 // pred_check
      _
    $region7: #{tpu_custom_call.1} parent=1 // pred_check_branch
      %24 = sbr.rel (0) target = $region9
    $region8: #{tpu_custom_call.1} parent=1 // pred_region
      _
    $region9: #{tpu_custom_call.1} parent=1 // pred_fallthru
      _
    // Predicated region
    $region10: #{tpu_custom_call.1} parent=1 // pred_check
      _
    $region11: #{tpu_custom_call.1} parent=1 // pred_check_branch
      %26 = sbr.rel (0) target = $region13
    $region12: #{tpu_custom_call.1} parent=1 // pred_region
      _
    $region13: #{tpu_custom_call.1} parent=1 // pred_fallthru
      _
    // Predicated region
    $region14: #{tpu_custom_call.1} parent=1 // pred_check
      _
    $region15: #{tpu_custom_call.1} parent=1 // pred_check_branch
      %28 = sbr.rel (0) target = $region17
    $region16: #{tpu_custom_call.1} parent=1 // pred_region
      %29 = dma.done [#allocation7], 2048
    $region17: #{tpu_custom_call.1} parent=1 // pred_fallthru
      _
    %p30 = scmp.eq.s32.totalorder 0, 0
    // Predicated region
    $region18: #{tpu_custom_call.1} parent=1 // pred_check
      %p31 = pneg %p30
    $region19: #{tpu_custom_call.1} parent=1 // pred_check_branch
      %33 = sbr.rel (%p31) target = $region21
    $region20: #{tpu_custom_call.1} parent=1 // pred_region
      %vm34 = vcmask 7168
      %35 = vst.msk [vmem:[#allocation2] sm:$0xff] %vm34, -inf
      %36 = vst.msk [vmem:[#allocation2 + $0x8] sm:$0xff] %vm34, -inf
      %37 = vst.msk [vmem:[#allocation3] sm:$0xff] %vm34, 0.0
      %38 = vst.msk [vmem:[#allocation3 + $0x8] sm:$0xff] %vm34, 0.0
      %39 = vst [vmem:[#allocation4] sm:$0xff] 0.0
      %40 = vst [vmem:[#allocation4 + $0x8] sm:$0xff] 0.0
    $region21: #{tpu_custom_call.1} parent=1 // pred_fallthru
      _
    %v41 = vld [vmem:[#allocation6] sm:$0xff]
    %v42 = vld [vmem:[#allocation6 + $0x8] sm:$0xff]
    %v43 = vld [vmem:[#allocation6 + $0x10] sm:$0xff]
    %v44 = vld [vmem:[#allocation6 + $0x18] sm:$0xff]
    %v45 = vld [vmem:[#allocation6 + $0x20] sm:$0xff]
    %v46 = vld [vmem:[#allocation6 + $0x28] sm:$0xff]
    %v47 = vld [vmem:[#allocation6 + $0x30] sm:$0xff]
    %v48 = vld [vmem:[#allocation6 + $0x38] sm:$0xff]
    %v49 = vld [vmem:[#allocation6 + $0x40] sm:$0xff]
    %v50 = vld [vmem:[#allocation6 + $0x48] sm:$0xff]
    %v51 = vld [vmem:[#allocation6 + $0x50] sm:$0xff]
    %v52 = vld [vmem:[#allocation6 + $0x58] sm:$0xff]
    %v53 = vld [vmem:[#allocation6 + $0x60] sm:$0xff]
    %v54 = vld [vmem:[#allocation6 + $0x68] sm:$0xff]
    %v55 = vld [vmem:[#allocation6 + $0x70] sm:$0xff]
    %v56 = vld [vmem:[#allocation6 + $0x78] sm:$0xff]
    %v57 = vld [vmem:[%s1] sm:$0x1]
    %s58 = sld [smem:[#allocation5]]
    %v60 = vlaneseq
    %v61 = vshrl.u32 %v60, 7
    %v62 = vsub.s32 0, %v61
    %v63 = vrot.slane %v57, %v62
    %v65 = vmul.f32 %v41, %v63
    %v66 = vmul.f32 %v42, %v63
    %v67 = vmul.f32 %v43, %v63
    %v68 = vmul.f32 %v44, %v63
    %v69 = vmul.f32 %v45, %v63
    %v70 = vmul.f32 %v46, %v63
    %v71 = vmul.f32 %v47, %v63
    %v72 = vmul.f32 %v48, %v63
    %v73 = vmul.f32 %v49, %v63
    %v74 = vmul.f32 %v50, %v63
    %v75 = vmul.f32 %v51, %v63
    %v76 = vmul.f32 %v52, %v63
    %v77 = vmul.f32 %v53, %v63
    %v78 = vmul.f32 %v54, %v63
    %v79 = vmul.f32 %v55, %v63
    %v80 = vmul.f32 %v56, %v63
    %81 = vadd.xlane.f32.xlu0 %v65
    %v82 = vpop.xlane.xlu0 %81
    %83 = vadd.xlane.f32.xlu0 %v66
    %v84 = vpop.xlane.xlu0 %83
    %85 = vadd.xlane.f32.xlu0 %v67
    %v86 = vpop.xlane.xlu0 %85
    %87 = vadd.xlane.f32.xlu0 %v68
    %v88 = vpop.xlane.xlu0 %87
    %89 = vadd.xlane.f32.xlu0 %v69
    %v90 = vpop.xlane.xlu0 %89
    %91 = vadd.xlane.f32.xlu0 %v70
    %v92 = vpop.xlane.xlu0 %91
    %93 = vadd.xlane.f32.xlu0 %v71
    %v94 = vpop.xlane.xlu0 %93
    %95 = vadd.xlane.f32.xlu0 %v72
    %v96 = vpop.xlane.xlu0 %95
    %97 = vadd.xlane.f32.xlu0 %v73
    %v98 = vpop.xlane.xlu0 %97
    %99 = vadd.xlane.f32.xlu0 %v74
    %v100 = vpop.xlane.xlu0 %99
    %101 = vadd.xlane.f32.xlu0 %v75
    %v102 = vpop.xlane.xlu0 %101
    %103 = vadd.xlane.f32.xlu0 %v76
    %v104 = vpop.xlane.xlu0 %103
    %105 = vadd.xlane.f32.xlu0 %v77
    %v106 = vpop.xlane.xlu0 %105
    %107 = vadd.xlane.f32.xlu0 %v78
    %v108 = vpop.xlane.xlu0 %107
    %109 = vadd.xlane.f32.xlu0 %v79
    %v110 = vpop.xlane.xlu0 %109
    %111 = vadd.xlane.f32.xlu0 %v80
    %v112 = vpop.xlane.xlu0 %111
    %v113 = vstv %s58
    %v114 = vadd.f32 %v82, %v113
    %v115 = vadd.f32 %v84, %v113
    %v116 = vadd.f32 %v86, %v113
    %v117 = vadd.f32 %v88, %v113
    %v118 = vadd.f32 %v90, %v113
    %v119 = vadd.f32 %v92, %v113
    %v120 = vadd.f32 %v94, %v113
    %v121 = vadd.f32 %v96, %v113
    %v122 = vadd.f32 %v98, %v113
    %v123 = vadd.f32 %v100, %v113
    %v124 = vadd.f32 %v102, %v113
    %v125 = vadd.f32 %v104, %v113
    %v126 = vadd.f32 %v106, %v113
    %v127 = vadd.f32 %v108, %v113
    %v128 = vadd.f32 %v110, %v113
    %v129 = vadd.f32 %v112, %v113
    %v130 = vld [vmem:[#allocation2] sm:$0xff]
    %v131 = vld [vmem:[#allocation2 + $0x8] sm:$0xff]
    %v148 = vlaneseq
    %v149 = vand.u32 %v148, 127
    %v150 = vlaneseq
    %v151 = vshrl.u32 %v150, 7
    %v152 = vsub.s32 %v149, %v151
    %v153 = vrot.slane %v114, %v152
    %v154 = vlaneseq
    %v155 = vshrl.u32 %v154, 7
    %v156 = vsub.s32 %v149, %v155
    %v157 = vrot.slane %v115, %v156
    %v158 = vlaneseq
    %v159 = vshrl.u32 %v158, 7
    %v160 = vsub.s32 %v149, %v159
    %v161 = vrot.slane %v116, %v160
    %v162 = vlaneseq
    %v163 = vshrl.u32 %v162, 7
    %v164 = vsub.s32 %v149, %v163
    %v165 = vrot.slane %v117, %v164
    %v166 = vlaneseq
    %v167 = vshrl.u32 %v166, 7
    %v168 = vsub.s32 %v149, %v167
    %v169 = vrot.slane %v118, %v168
    %v170 = vlaneseq
    %v171 = vshrl.u32 %v170, 7
    %v172 = vsub.s32 %v149, %v171
    %v173 = vrot.slane %v119, %v172
    %v174 = vlaneseq
    %v175 = vshrl.u32 %v174, 7
    %v176 = vsub.s32 %v149, %v175
    %v177 = vrot.slane %v120, %v176
    %v178 = vlaneseq
    %v179 = vshrl.u32 %v178, 7
    %v180 = vsub.s32 %v149, %v179
    %v181 = vrot.slane %v121, %v180
    %v182 = vlaneseq
    %v183 = vshrl.u32 %v182, 7
    %v184 = vsub.s32 %v149, %v183
    %v185 = vrot.slane %v122, %v184
    %v186 = vlaneseq
    %v187 = vshrl.u32 %v186, 7
    %v188 = vsub.s32 %v149, %v187
    %v189 = vrot.slane %v123, %v188
    %v190 = vlaneseq
    %v191 = vshrl.u32 %v190, 7
    %v192 = vsub.s32 %v149, %v191
    %v193 = vrot.slane %v124, %v192
    %v194 = vlaneseq
    %v195 = vshrl.u32 %v194, 7
    %v196 = vsub.s32 %v149, %v195
    %v197 = vrot.slane %v125, %v196
    %v198 = vlaneseq
    %v199 = vshrl.u32 %v198, 7
    %v200 = vsub.s32 %v149, %v199
    %v201 = vrot.slane %v126, %v200
    %v202 = vlaneseq
    %v203 = vshrl.u32 %v202, 7
    %v204 = vsub.s32 %v149, %v203
    %v205 = vrot.slane %v127, %v204
    %v206 = vlaneseq
    %v207 = vshrl.u32 %v206, 7
    %v208 = vsub.s32 %v149, %v207
    %v209 = vrot.slane %v128, %v208
    %v210 = vlaneseq
    %v211 = vshrl.u32 %v210, 7
    %v212 = vsub.s32 %v149, %v211
    %v213 = vrot.slane %v129, %v212
    %vm214 = vcmask 1041409
    %v215 = vsel %vm214, %v157, %v153
    %vm216 = vcmask 1042434
    %v217 = vsel %vm216, %v161, %v215
    %vm218 = vcmask 1043459
    %v219 = vsel %vm218, %v165, %v217
    %vm220 = vcmask 1044484
    %v221 = vsel %vm220, %v169, %v219
    %vm222 = vcmask 1045509
    %v223 = vsel %vm222, %v173, %v221
    %vm224 = vcmask 1046534
    %v225 = vsel %vm224, %v177, %v223
    %vm226 = vcmask 1047559
    %v227 = vsel %vm226, %v181, %v225
    %v228 = vsel %vm214, %v189, %v185
    %v229 = vsel %vm216, %v193, %v228
    %v230 = vsel %vm218, %v197, %v229
    %v231 = vsel %vm220, %v201, %v230
    %v232 = vsel %vm222, %v205, %v231
    %v233 = vsel %vm224, %v209, %v232
    %v234 = vsel %vm226, %v213, %v233
    %vm237 = vcmask 64512
    %v238 = vsel %vm237, %v227, -inf
    %239 = vmax.xlane.f32.xlu0 %v238
    %v240 = vpop.xlane.xlu0 %239
    %v241 = vsel %vm237, %v234, -inf
    %242 = vmax.xlane.f32.xlu0 %v241
    %v243 = vpop.xlane.xlu0 %242
    %v244 = vmax.f32 %v130, %v240
    %v245 = vmax.f32 %v131, %v243
    %v246 = vsub.f32 %v130, %v244
    %v247 = vsub.f32 %v131, %v245
    %v248 = vmul.f32 %v246, 1.442695
    %v249 = vpow.pop %v248
    %v250 = vmul.f32 %v247, 1.442695
    %v251 = vpow.pop %v250
    %253 = vset.pattern.permute.xlu0 0
    %254 = vperm.xlu0 %253, %v244
    %v255 = vpop.permute.xlu0 %254
    %257 = vset.pattern.permute.xlu0 0
    %258 = vperm.xlu0 %257, %v245
    %v259 = vpop.permute.xlu0 %258
    %v260 = vlaneseq
    %v261 = vshrl.u32 %v260, 7
    %v262 = vsub.s32 0, %v261
    %v263 = vrot.slane %v255, %v262
    %v264 = vlaneseq
    %v265 = vshrl.u32 %v264, 7
    %v266 = vsub.s32 1, %v265
    %v267 = vrot.slane %v255, %v266
    %v268 = vlaneseq
    %v269 = vshrl.u32 %v268, 7
    %v270 = vsub.s32 2, %v269
    %v271 = vrot.slane %v255, %v270
    %v272 = vlaneseq
    %v273 = vshrl.u32 %v272, 7
    %v274 = vsub.s32 3, %v273
    %v275 = vrot.slane %v255, %v274
    %v276 = vlaneseq
    %v277 = vshrl.u32 %v276, 7
    %v278 = vsub.s32 4, %v277
    %v279 = vrot.slane %v255, %v278
    %v280 = vlaneseq
    %v281 = vshrl.u32 %v280, 7
    %v282 = vsub.s32 5, %v281
    %v283 = vrot.slane %v255, %v282
    %v284 = vlaneseq
    %v285 = vshrl.u32 %v284, 7
    %v286 = vsub.s32 6, %v285
    %v287 = vrot.slane %v255, %v286
    %v288 = vlaneseq
    %v289 = vshrl.u32 %v288, 7
    %v290 = vsub.s32 7, %v289
    %v291 = vrot.slane %v255, %v290
    %v292 = vlaneseq
    %v293 = vshrl.u32 %v292, 7
    %v294 = vsub.s32 0, %v293
    %v295 = vrot.slane %v259, %v294
    %v296 = vlaneseq
    %v297 = vshrl.u32 %v296, 7
    %v298 = vsub.s32 1, %v297
    %v299 = vrot.slane %v259, %v298
    %v300 = vlaneseq
    %v301 = vshrl.u32 %v300, 7
    %v302 = vsub.s32 2, %v301
    %v303 = vrot.slane %v259, %v302
    %v304 = vlaneseq
    %v305 = vshrl.u32 %v304, 7
    %v306 = vsub.s32 3, %v305
    %v307 = vrot.slane %v259, %v306
    %v308 = vlaneseq
    %v309 = vshrl.u32 %v308, 7
    %v310 = vsub.s32 4, %v309
    %v311 = vrot.slane %v259, %v310
    %v312 = vlaneseq
    %v313 = vshrl.u32 %v312, 7
    %v314 = vsub.s32 5, %v313
    %v315 = vrot.slane %v259, %v314
    %v316 = vlaneseq
    %v317 = vshrl.u32 %v316, 7
    %v318 = vsub.s32 6, %v317
    %v319 = vrot.slane %v259, %v318
    %v320 = vlaneseq
    %v321 = vshrl.u32 %v320, 7
    %v322 = vsub.s32 7, %v321
    %v323 = vrot.slane %v259, %v322
    %v340 = vsub.f32 %v114, %v263
    %v341 = vsub.f32 %v115, %v267
    %v342 = vsub.f32 %v116, %v271
    %v343 = vsub.f32 %v117, %v275
    %v344 = vsub.f32 %v118, %v279
    %v345 = vsub.f32 %v119, %v283
    %v346 = vsub.f32 %v120, %v287
    %v347 = vsub.f32 %v121, %v291
    %v348 = vsub.f32 %v122, %v295
    %v349 = vsub.f32 %v123, %v299
    %v350 = vsub.f32 %v124, %v303
    %v351 = vsub.f32 %v125, %v307
    %v352 = vsub.f32 %v126, %v311
    %v353 = vsub.f32 %v127, %v315
    %v354 = vsub.f32 %v128, %v319
    %v355 = vsub.f32 %v129, %v323
    %v356 = vmul.f32 %v340, 1.442695
    %v357 = vpow.pop %v356
    %v358 = vmul.f32 %v341, 1.442695
    %v359 = vpow.pop %v358
    %v360 = vmul.f32 %v342, 1.442695
    %v361 = vpow.pop %v360
    %v362 = vmul.f32 %v343, 1.442695
    %v363 = vpow.pop %v362
    %v364 = vmul.f32 %v344, 1.442695
    %v365 = vpow.pop %v364
    %v366 = vmul.f32 %v345, 1.442695
    %v367 = vpow.pop %v366
    %v368 = vmul.f32 %v346, 1.442695
    %v369 = vpow.pop %v368
    %v370 = vmul.f32 %v347, 1.442695
    %v371 = vpow.pop %v370
    %v372 = vmul.f32 %v348, 1.442695
    %v373 = vpow.pop %v372
    %v374 = vmul.f32 %v349, 1.442695
    %v375 = vpow.pop %v374
    %v376 = vmul.f32 %v350, 1.442695
    %v377 = vpow.pop %v376
    %v378 = vmul.f32 %v351, 1.442695
    %v379 = vpow.pop %v378
    %v380 = vmul.f32 %v352, 1.442695
    %v381 = vpow.pop %v380
    %v382 = vmul.f32 %v353, 1.442695
    %v383 = vpow.pop %v382
    %v384 = vmul.f32 %v354, 1.442695
    %v385 = vpow.pop %v384
    %v386 = vmul.f32 %v355, 1.442695
    %v387 = vpow.pop %v386
    %v388 = vld [vmem:[#allocation3] sm:$0xff]
    %v389 = vld [vmem:[#allocation3 + $0x8] sm:$0xff]
    %v390 = vmul.f32 %v249, %v388
    %v391 = vmul.f32 %v251, %v389
    %408 = vset.pattern.permute.xlu0 0
    %409 = vperm.xlu0 %408, %v357
    %v410 = vpop.permute.xlu0 %409
    %411 = vset.pattern.permute.xlu0 0
    %412 = vperm.xlu0 %411, %v359
    %v413 = vpop.permute.xlu0 %412
    %414 = vset.pattern.permute.xlu0 0
    %415 = vperm.xlu0 %414, %v361
    %v416 = vpop.permute.xlu0 %415
    %417 = vset.pattern.permute.xlu0 0
    %418 = vperm.xlu0 %417, %v363
    %v419 = vpop.permute.xlu0 %418
    %420 = vset.pattern.permute.xlu0 0
    %421 = vperm.xlu0 %420, %v365
    %v422 = vpop.permute.xlu0 %421
    %423 = vset.pattern.permute.xlu0 0
    %424 = vperm.xlu0 %423, %v367
    %v425 = vpop.permute.xlu0 %424
    %426 = vset.pattern.permute.xlu0 0
    %427 = vperm.xlu0 %426, %v369
    %v428 = vpop.permute.xlu0 %427
    %429 = vset.pattern.permute.xlu0 0
    %430 = vperm.xlu0 %429, %v371
    %v431 = vpop.permute.xlu0 %430
    %432 = vset.pattern.permute.xlu0 0
    %433 = vperm.xlu0 %432, %v373
    %v434 = vpop.permute.xlu0 %433
    %435 = vset.pattern.permute.xlu0 0
    %436 = vperm.xlu0 %435, %v375
    %v437 = vpop.permute.xlu0 %436
    %438 = vset.pattern.permute.xlu0 0
    %439 = vperm.xlu0 %438, %v377
    %v440 = vpop.permute.xlu0 %439
    %441 = vset.pattern.permute.xlu0 0
    %442 = vperm.xlu0 %441, %v379
    %v443 = vpop.permute.xlu0 %442
    %444 = vset.pattern.permute.xlu0 0
    %445 = vperm.xlu0 %444, %v381
    %v446 = vpop.permute.xlu0 %445
    %447 = vset.pattern.permute.xlu0 0
    %448 = vperm.xlu0 %447, %v383
    %v449 = vpop.permute.xlu0 %448
    %450 = vset.pattern.permute.xlu0 0
    %451 = vperm.xlu0 %450, %v385
    %v452 = vpop.permute.xlu0 %451
    %453 = vset.pattern.permute.xlu0 0
    %454 = vperm.xlu0 %453, %v387
    %v455 = vpop.permute.xlu0 %454
    %v456 = vlaneseq
    %v457 = vshrl.u32 %v456, 7
    %v458 = vsub.s32 %v149, %v457
    %v459 = vrot.slane %v410, %v458
    %v460 = vlaneseq
    %v461 = vshrl.u32 %v460, 7
    %v462 = vsub.s32 %v149, %v461
    %v463 = vrot.slane %v413, %v462
    %v464 = vlaneseq
    %v465 = vshrl.u32 %v464, 7
    %v466 = vsub.s32 %v149, %v465
    %v467 = vrot.slane %v416, %v466
    %v468 = vlaneseq
    %v469 = vshrl.u32 %v468, 7
    %v470 = vsub.s32 %v149, %v469
    %v471 = vrot.slane %v419, %v470
    %v472 = vlaneseq
    %v473 = vshrl.u32 %v472, 7
    %v474 = vsub.s32 %v149, %v473
    %v475 = vrot.slane %v422, %v474
    %v476 = vlaneseq
    %v477 = vshrl.u32 %v476, 7
    %v478 = vsub.s32 %v149, %v477
    %v479 = vrot.slane %v425, %v478
    %v480 = vlaneseq
    %v481 = vshrl.u32 %v480, 7
    %v482 = vsub.s32 %v149, %v481
    %v483 = vrot.slane %v428, %v482
    %v484 = vlaneseq
    %v485 = vshrl.u32 %v484, 7
    %v486 = vsub.s32 %v149, %v485
    %v487 = vrot.slane %v431, %v486
    %v488 = vlaneseq
    %v489 = vshrl.u32 %v488, 7
    %v490 = vsub.s32 %v149, %v489
    %v491 = vrot.slane %v434, %v490
    %v492 = vlaneseq
    %v493 = vshrl.u32 %v492, 7
    %v494 = vsub.s32 %v149, %v493
    %v495 = vrot.slane %v437, %v494
    %v496 = vlaneseq
    %v497 = vshrl.u32 %v496, 7
    %v498 = vsub.s32 %v149, %v497
    %v499 = vrot.slane %v440, %v498
    %v500 = vlaneseq
    %v501 = vshrl.u32 %v500, 7
    %v502 = vsub.s32 %v149, %v501
    %v503 = vrot.slane %v443, %v502
    %v504 = vlaneseq
    %v505 = vshrl.u32 %v504, 7
    %v506 = vsub.s32 %v149, %v505
    %v507 = vrot.slane %v446, %v506
    %v508 = vlaneseq
    %v509 = vshrl.u32 %v508, 7
    %v510 = vsub.s32 %v149, %v509
    %v511 = vrot.slane %v449, %v510
    %v512 = vlaneseq
    %v513 = vshrl.u32 %v512, 7
    %v514 = vsub.s32 %v149, %v513
    %v515 = vrot.slane %v452, %v514
    %v516 = vlaneseq
    %v517 = vshrl.u32 %v516, 7
    %v518 = vsub.s32 %v149, %v517
    %v519 = vrot.slane %v455, %v518
    %v520 = vsel %vm214, %v463, %v459
    %v521 = vsel %vm216, %v467, %v520
    %v522 = vsel %vm218, %v471, %v521
    %v523 = vsel %vm220, %v475, %v522
    %v524 = vsel %vm222, %v479, %v523
    %v525 = vsel %vm224, %v483, %v524
    %v526 = vsel %vm226, %v487, %v525
    %v527 = vsel %vm214, %v495, %v491
    %v528 = vsel %vm216, %v499, %v527
    %v529 = vsel %vm218, %v503, %v528
    %v530 = vsel %vm220, %v507, %v529
    %v531 = vsel %vm222, %v511, %v530
    %v532 = vsel %vm224, %v515, %v531
    %v533 = vsel %vm226, %v519, %v532
    %v536 = vsel %vm237, %v526, 0.0
    %537 = vadd.xlane.f32.xlu0 %v536
    %v538 = vpop.xlane.xlu0 %537
    %v539 = vsel %vm237, %v533, 0.0
    %540 = vadd.xlane.f32.xlu0 %v539
    %v541 = vpop.xlane.xlu0 %540
    %v542 = vadd.f32 %v390, %v538
    %v543 = vadd.f32 %v391, %v541
    %vm544 = vcmask 7168
    %545 = vst.msk [vmem:[#allocation3] sm:$0xff] %vm544, %v542
    %546 = vst.msk [vmem:[#allocation3 + $0x8] sm:$0xff] %vm544, %v543
    %v547 = vld [vmem:[#allocation4] sm:$0xff]
    %v548 = vld [vmem:[#allocation4 + $0x8] sm:$0xff]
    %550 = vset.pattern.permute.xlu0 0
    %551 = vperm.xlu0 %550, %v249
    %v552 = vpop.permute.xlu0 %551
    %555 = vset.pattern.permute.xlu0 0
    %556 = vperm.xlu0 %555, %v251
    %v557 = vpop.permute.xlu0 %556
    %v559 = vmul.f32 %v552, %v547
    %v560 = vmul.f32 %v557, %v548
    %v577 = vmul.f32 %v41, %v410
    %v578 = vmul.f32 %v42, %v413
    %v579 = vmul.f32 %v43, %v416
    %v580 = vmul.f32 %v44, %v419
    %v581 = vmul.f32 %v45, %v422
    %v582 = vmul.f32 %v46, %v425
    %v583 = vmul.f32 %v47, %v428
    %v584 = vmul.f32 %v48, %v431
    %v585 = vmul.f32 %v49, %v434
    %v586 = vmul.f32 %v50, %v437
    %v587 = vmul.f32 %v51, %v440
    %v588 = vmul.f32 %v52, %v443
    %v589 = vmul.f32 %v53, %v446
    %v590 = vmul.f32 %v54, %v449
    %v591 = vmul.f32 %v55, %v452
    %v592 = vmul.f32 %v56, %v455
    %v593 = vrot.slane %v577, 4
    %v594 = vadd.f32 %v577, %v593
    %v595 = vrot.slane %v594, 2
    %v596 = vadd.f32 %v594, %v595
    %v597 = vrot.slane %v596, 1
    %v598 = vadd.f32 %v596, %v597
    %v599 = vrot.slane %v578, 4
    %v600 = vadd.f32 %v578, %v599
    %v601 = vrot.slane %v600, 2
    %v602 = vadd.f32 %v600, %v601
    %v603 = vrot.slane %v602, 1
    %v604 = vadd.f32 %v602, %v603
    %v605 = vrot.slane %v579, 4
    %v606 = vadd.f32 %v579, %v605
    %v607 = vrot.slane %v606, 2
    %v608 = vadd.f32 %v606, %v607
    %v609 = vrot.slane %v608, 1
    %v610 = vadd.f32 %v608, %v609
    %v611 = vrot.slane %v580, 4
    %v612 = vadd.f32 %v580, %v611
    %v613 = vrot.slane %v612, 2
    %v614 = vadd.f32 %v612, %v613
    %v615 = vrot.slane %v614, 1
    %v616 = vadd.f32 %v614, %v615
    %v617 = vrot.slane %v581, 4
    %v618 = vadd.f32 %v581, %v617
    %v619 = vrot.slane %v618, 2
    %v620 = vadd.f32 %v618, %v619
    %v621 = vrot.slane %v620, 1
    %v622 = vadd.f32 %v620, %v621
    %v623 = vrot.slane %v582, 4
    %v624 = vadd.f32 %v582, %v623
    %v625 = vrot.slane %v624, 2
    %v626 = vadd.f32 %v624, %v625
    %v627 = vrot.slane %v626, 1
    %v628 = vadd.f32 %v626, %v627
    %v629 = vrot.slane %v583, 4
    %v630 = vadd.f32 %v583, %v629
    %v631 = vrot.slane %v630, 2
    %v632 = vadd.f32 %v630, %v631
    %v633 = vrot.slane %v632, 1
    %v634 = vadd.f32 %v632, %v633
    %v635 = vrot.slane %v584, 4
    %v636 = vadd.f32 %v584, %v635
    %v637 = vrot.slane %v636, 2
    %v638 = vadd.f32 %v636, %v637
    %v639 = vrot.slane %v638, 1
    %v640 = vadd.f32 %v638, %v639
    %v641 = vrot.slane %v585, 4
    %v642 = vadd.f32 %v585, %v641
    %v643 = vrot.slane %v642, 2
    %v644 = vadd.f32 %v642, %v643
    %v645 = vrot.slane %v644, 1
    %v646 = vadd.f32 %v644, %v645
    %v647 = vrot.slane %v586, 4
    %v648 = vadd.f32 %v586, %v647
    %v649 = vrot.slane %v648, 2
    %v650 = vadd.f32 %v648, %v649
    %v651 = vrot.slane %v650, 1
    %v652 = vadd.f32 %v650, %v651
    %v653 = vrot.slane %v587, 4
    %v654 = vadd.f32 %v587, %v653
    %v655 = vrot.slane %v654, 2
    %v656 = vadd.f32 %v654, %v655
    %v657 = vrot.slane %v656, 1
    %v658 = vadd.f32 %v656, %v657
    %v659 = vrot.slane %v588, 4
    %v660 = vadd.f32 %v588, %v659
    %v661 = vrot.slane %v660, 2
    %v662 = vadd.f32 %v660, %v661
    %v663 = vrot.slane %v662, 1
    %v664 = vadd.f32 %v662, %v663
    %v665 = vrot.slane %v589, 4
    %v666 = vadd.f32 %v589, %v665
    %v667 = vrot.slane %v666, 2
    %v668 = vadd.f32 %v666, %v667
    %v669 = vrot.slane %v668, 1
    %v670 = vadd.f32 %v668, %v669
    %v671 = vrot.slane %v590, 4
    %v672 = vadd.f32 %v590, %v671
    %v673 = vrot.slane %v672, 2
    %v674 = vadd.f32 %v672, %v673
    %v675 = vrot.slane %v674, 1
    %v676 = vadd.f32 %v674, %v675
    %v677 = vrot.slane %v591, 4
    %v678 = vadd.f32 %v591, %v677
    %v679 = vrot.slane %v678, 2
    %v680 = vadd.f32 %v678, %v679
    %v681 = vrot.slane %v680, 1
    %v682 = vadd.f32 %v680, %v681
    %v683 = vrot.slane %v592, 4
    %v684 = vadd.f32 %v592, %v683
    %v685 = vrot.slane %v684, 2
    %v686 = vadd.f32 %v684, %v685
    %v687 = vrot.slane %v686, 1
    %v688 = vadd.f32 %v686, %v687
    %v705 = vsel %vm214, %v604, %v598
    %v706 = vsel %vm216, %v610, %v705
    %v707 = vsel %vm218, %v616, %v706
    %v708 = vsel %vm220, %v622, %v707
    %v709 = vsel %vm222, %v628, %v708
    %v710 = vsel %vm224, %v634, %v709
    %v711 = vsel %vm226, %v640, %v710
    %v712 = vsel %vm214, %v652, %v646
    %v713 = vsel %vm216, %v658, %v712
    %v714 = vsel %vm218, %v664, %v713
    %v715 = vsel %vm220, %v670, %v714
    %v716 = vsel %vm222, %v676, %v715
    %v717 = vsel %vm224, %v682, %v716
    %v718 = vsel %vm226, %v688, %v717
    %v721 = vadd.f32 %v559, %v711
    %v722 = vadd.f32 %v560, %v718
    %723 = vst [vmem:[#allocation4] sm:$0xff] %v721
    %724 = vst [vmem:[#allocation4 + $0x8] sm:$0xff] %v722
    %725 = vst.msk [vmem:[#allocation2] sm:$0xff] %vm544, %v244
    %726 = vst.msk [vmem:[#allocation2 + $0x8] sm:$0xff] %vm544, %v245
    // Predicated region
    $region22: #{tpu_custom_call.1} parent=1 // pred_check
      %p727 = pneg %p30
    $region23: #{tpu_custom_call.1} parent=1 // pred_check_branch
      %729 = sbr.rel (%p727) target = $region25
    $region24: #{tpu_custom_call.1} parent=1 // pred_region
      %v730 = vld [vmem:[#allocation3] sm:$0xff]
      %v731 = vld [vmem:[#allocation3 + $0x8] sm:$0xff]
      %v732 = vrcp.pop %v730
      %v733 = vrcp.pop %v731
      %v734 = vld [vmem:[#allocation4] sm:$0xff]
      %v735 = vld [vmem:[#allocation4 + $0x8] sm:$0xff]
      %737 = vset.pattern.permute.xlu0 0
      %738 = vperm.xlu0 %737, %v732
      %v739 = vpop.permute.xlu0 %738
      %742 = vset.pattern.permute.xlu0 0
      %743 = vperm.xlu0 %742, %v733
      %v744 = vpop.permute.xlu0 %743
      %v746 = vmul.f32 %v734, %v739
      %v747 = vmul.f32 %v735, %v744
      %748 = vst [vmem:[#allocation9] sm:$0xff] %v746
      %749 = vst [vmem:[#allocation9 + $0x8] sm:$0xff] %v747
    $region25: #{tpu_custom_call.1} parent=1 // pred_fallthru
      _
    // Predicated region
    $region26: #{tpu_custom_call.1} parent=1 // pred_check
      _
    $region27: #{tpu_custom_call.1} parent=1 // pred_check_branch
      %751 = sbr.rel (0) target = $region29
    $region28: #{tpu_custom_call.1} parent=1 // pred_region
      %s753 = ssub.s32 256, 256
      %754 = vsyncadd [#allocation8], %s753
      %s755 = sshll.u32 [#allocation9], 4
      %s756 = int_to_ptr.vmem [resolvable:$true] %s755
      %761 = dma.vmem_to_hbm [thread:$0]  %s756, 256, %s3, [#allocation8], 128, 128, 8
    $region29: #{tpu_custom_call.1} parent=1 // pred_fallthru
      _
    // Predicated region
    $region30: #{tpu_custom_call.1} parent=1 // pred_check
      _
    $region31: #{tpu_custom_call.1} parent=1 // pred_check_branch
      %763 = sbr.rel (0) target = $region33
    $region32: #{tpu_custom_call.1} parent=1 // pred_region
      %764 = dma.done [#allocation8], 256
    $region33: #{tpu_custom_call.1} parent=1 // pred_fallthru
      _
    %765 = vsyncpa [#allocation7], 1
    %766 = vsyncpa [#allocation8], 1

</llo_original>
